<compile_context>
chip_gen: v5e
topology: v5e:2x2
jax: 0.10.0
libtpu: 0.0.40
codegen_flags: <defaults>
</compile_context>

<pallas_src>
import jax
import jax.numpy as jnp
from jax.experimental import pallas as pl
from jax.experimental.pallas import tpu as pltpu


# ---------------------------------------------------------------- kernel -----

def _prelu(x, a):
    return jnp.where(x >= 0, x, a * x)


def _conv_rows(xp_ref, w_ref, H):
    # xp_ref : (H+2, W*Cin)  f32, zero-padded rows (W padding is inside w_ref)
    # w_ref  : (3, W*Cin, W*Cout)  bf16 banded conv matrices, one per dy tap
    xb = xp_ref[...].astype(jnp.bfloat16)          # cast each row once for the MXU
    acc = jnp.dot(xb[0:H, :], w_ref[0], preferred_element_type=jnp.float32)
    acc = acc + jnp.dot(xb[1:H + 1, :], w_ref[1], preferred_element_type=jnp.float32)
    acc = acc + jnp.dot(xb[2:H + 2, :], w_ref[2], preferred_element_type=jnp.float32)
    return acc


def fused_up_kernel(x_ref, bn_ref, cp_ref, w1_ref, w2_ref, o_ref, xp1, xp2):
    """BN -> conv3x3 -> PReLU -> conv3x3 -> PReLU(PReLU) for one image.

    Layout: activations are (H, W*C) with W*C on the 128-lane axis.
    Each 3x3 conv = 3 MXU matmuls (H, W*Cin) @ (W*Cin, W*Cout), one per
    vertical tap; horizontal zero-padding lives in the band matrices,
    vertical zero-padding is two zero rows in the VMEM scratch.

    bn_ref : (2, W*Cin)   rows = [bn_scale, bn_bias]
    cp_ref : (4, W*Cout)  rows = [b1, a1, b2, a23]  (a23 = fused trailing PReLUs)
    """
    H = o_ref.shape[1]
    Kin = xp1.shape[1]
    Kout = xp2.shape[1]

    # --- conv zero-padding border rows.  Written every step (4 cheap 1-row
    #     stores); a pl.program_id(0)==0 guard would be wrong when the
    #     "parallel" axis is sharded across TensorCores (megacore / v7x).
    zin = jnp.zeros((1, Kin), jnp.float32)
    zout = jnp.zeros((1, Kout), jnp.float32)
    xp1[0:1, :] = zin
    xp1[H + 1:H + 2, :] = zin
    xp2[0:1, :] = zout
    xp2[H + 1:H + 2, :] = zout

    # --- BatchNorm (eval) as a fused affine, interior rows only so the conv's
    #     zero-padding at the image border stays exact.
    xp1[1:H + 1, :] = x_ref[0] * bn_ref[0:1, :] + bn_ref[1:2, :]

    # --- conv1 + PReLU #1 -----------------------------------------------------
    y1 = _conv_rows(xp1, w1_ref, H) + cp_ref[0:1, :]
    y1 = _prelu(y1, cp_ref[1:2, :])

    # --- conv2 + fused PReLU #2/#3; intermediate stays in VMEM -----------------
    xp2[1:H + 1, :] = y1
    y2 = _conv_rows(xp2, w2_ref, H) + cp_ref[2:3, :]
    y2 = _prelu(y2, cp_ref[3:4, :])

    o_ref[0] = y2.astype(o_ref.dtype)


# --------------------------------------------------------------- wrappers ----

def banded_conv_matrix(wgt, W):
    """Expand an HWIO 3x3 kernel into 3 banded (W*Cin, W*Cout) matrices so a
    padding=1 conv over the (H, W*C) flattened-width layout becomes
        y[h] = sum_dy rows[h+dy] @ band[dy]
    with rows zero-padded in h.  Off-band zeros implement the W padding."""
    _, _, Cin, Cout = wgt.shape
    wp = jnp.arange(W)[:, None]          # source column index
    wo = jnp.arange(W)[None, :]          # output column index
    sel = jnp.stack([(wp == wo + dx - 1) for dx in range(3)], axis=0)
    sel = sel.astype(wgt.dtype)                               # (3, W, W)
    band = jnp.einsum("yxio,xpw->ypiwo", wgt, sel)            # (3, W, Cin, W, Cout)
    return band.reshape(3, W * Cin, W * Cout)


def pixel_shuffle_nchw(x, r):
    # torch.nn.PixelShuffle semantics on NCHW
    N, C, H, W = x.shape
    Co = C // (r * r)
    x = x.reshape(N, Co, r, r, H, W)
    x = x.transpose(0, 1, 4, 2, 5, 3)
    return x.reshape(N, Co, H * r, W * r)


def up_forward(x1, x2, params):
    """x1, x2 in NCHW (PyTorch convention); returns NCHW."""
    r = params["upscale"]
    x1u = pixel_shuffle_nchw(x1, r)
    x = jnp.concatenate([x2, x1u], axis=1)                    # cat([x2, x1], dim=1)
    N, Cin, H, W = x.shape
    Cout = params["w1"].shape[-1]

    # lane-dense activation layout: (N, H, W*Cin)
    x = jnp.transpose(x, (0, 2, 3, 1)).reshape(N, H, W * Cin)

    # eval-mode BN folded to per-channel scale/bias, tiled over W (lane vectors)
    eps = 1e-5
    scale = params["bn_gamma"] / jnp.sqrt(params["bn_var"] + eps)
    bias = params["bn_beta"] - params["bn_mean"] * scale
    bn_pack = jnp.stack([jnp.tile(scale, W), jnp.tile(bias, W)], axis=0)   # (2, W*Cin)

    # fuse the two trailing PReLUs exactly: prelu(prelu(x,a2),a3) == prelu(x, a23)
    a23 = jnp.where(params["a2"] >= 0, params["a2"] * params["a3"], params["a2"])
    conv_pack = jnp.stack([jnp.tile(params["b1"], W),
                           jnp.tile(params["a1"], W),
                           jnp.tile(params["b2"], W),
                           jnp.tile(a23, W)], axis=0)                      # (4, W*Cout)

    # banded conv weights in bf16 (f32 accumulate happens in the kernel)
    w1b = banded_conv_matrix(params["w1"], W).astype(jnp.bfloat16)   # (3, W*Cin,  W*Cout)
    w2b = banded_conv_matrix(params["w2"], W).astype(jnp.bfloat16)   # (3, W*Cout, W*Cout)

    flops = N * 3 * 2 * H * (W * Cin * W * Cout + W * Cout * W * Cout)
    bytes_accessed = (4 * (x.size + N * H * W * Cout + bn_pack.size + conv_pack.size)
                      + 2 * (w1b.size + w2b.size))

    # Resident whole-array VMEM spec for constants (no per-step DMA, no
    # double buffering of the weight bands).
    def resident():
        return pl.BlockSpec(memory_space=pltpu.MemorySpace.VMEM)

    out_flat = pl.pallas_call(
        fused_up_kernel,
        out_shape=jax.ShapeDtypeStruct((N, H, W * Cout), x.dtype),
        grid=(N,),
        in_specs=[
            pl.BlockSpec((1, H, W * Cin), lambda n: (n, 0, 0)),   # activations (streamed)
            resident(),                                           # bn_pack
            resident(),                                           # conv_pack
            resident(),                                           # w1 bands
            resident(),                                           # w2 bands
        ],
        out_specs=pl.BlockSpec((1, H, W * Cout), lambda n: (n, 0, 0)),
        scratch_shapes=[
            pltpu.VMEM((H + 2, W * Cin), jnp.float32),   # row-padded conv1 input
            pltpu.VMEM((H + 2, W * Cout), jnp.float32),  # row-padded conv2 input
        ],
        compiler_params=pltpu.CompilerParams(dimension_semantics=("parallel",)),
        cost_estimate=pl.CostEstimate(flops=flops, transcendentals=0,
                                      bytes_accessed=bytes_accessed),
    )(x, bn_pack, conv_pack, w1b, w2b)

    out = out_flat.reshape(N, H, W, Cout)
    return jnp.transpose(out, (0, 3, 1, 2))                   # -> NCHW


# --------------------------------------------------------- pure-JAX reference

def up_reference(x1, x2, params):
    r = params["upscale"]
    x1u = pixel_shuffle_nchw(x1, r)
    x = jnp.concatenate([x2, x1u], axis=1)
    x = jnp.transpose(x, (0, 2, 3, 1))
    eps = 1e-5
    scale = params["bn_gamma"] / jnp.sqrt(params["bn_var"] + eps)
    bias = params["bn_beta"] - params["bn_mean"] * scale
    x = x * scale + bias

    def conv(x, w, b):
        y = jax.lax.conv_general_dilated(
            x, w, window_strides=(1, 1), padding=((1, 1), (1, 1)),
            dimension_numbers=("NHWC", "HWIO", "NHWC"))
        return y + b

    def prelu(x, a):
        return jnp.where(x >= 0, x, a * x)

    x = prelu(conv(x, params["w1"], params["b1"]), params["a1"])
    x = prelu(conv(x, params["w2"], params["b2"]), params["a2"])
    x = prelu(x, params["a3"])
    return jnp.transpose(x, (0, 3, 1, 2))


# -------------------------------------------------------------------- main ---

if __name__ == "__main__":
    key = jax.random.PRNGKey(0)
    ks = jax.random.split(key, 12)

    # small shapes: Up(in_channels=8, out_channels=8, upscale_factor=2)
    N, r = 2, 2
    C1_pre, H1, W1 = 16, 8, 8          # x1 before pixel shuffle
    C1 = C1_pre // (r * r)             # 4 channels after shuffle
    C2 = 4                             # x2 channels
    in_ch = C1 + C2                    # 8
    out_ch = 8
    H, W = H1 * r, W1 * r              # 16, 16

    x1 = jax.random.normal(ks[0], (N, C1_pre, H1, W1), jnp.float32)
    x2 = jax.random.normal(ks[1], (N, C2, H, W), jnp.float32)

    params = {
        "upscale": r,
        # BatchNorm2d(in_ch) — eval mode, deterministic synthetic stats
        "bn_gamma": jax.random.uniform(ks[2], (in_ch,), jnp.float32, 0.5, 1.5),
        "bn_beta":  0.1 * jax.random.normal(ks[3], (in_ch,), jnp.float32),
        "bn_mean":  0.1 * jax.random.normal(ks[4], (in_ch,), jnp.float32),
        "bn_var":   jax.random.uniform(ks[5], (in_ch,), jnp.float32, 0.5, 1.5),
        # Conv2d(in_ch, out_ch, 3, padding=1) — HWIO layout
        "w1": 0.1 * jax.random.normal(ks[6], (3, 3, in_ch, out_ch), jnp.float32),
        "b1": 0.05 * jax.random.normal(ks[7], (out_ch,), jnp.float32),
        # Conv2d(out_ch, out_ch, 3, padding=1)
        "w2": 0.1 * jax.random.normal(ks[8], (3, 3, out_ch, out_ch), jnp.float32),
        "b2": 0.05 * jax.random.normal(ks[9], (out_ch,), jnp.float32),
        # PReLU default init: 0.25 per channel
        "a1": jnp.full((out_ch,), 0.25, jnp.float32),
        "a2": jnp.full((out_ch,), 0.25, jnp.float32),
        "a3": jnp.full((out_ch,), 0.25, jnp.float32),
    }

    out = jax.block_until_ready(up_forward(x1, x2, params))
    ref = jax.block_until_ready(up_reference(x1, x2, params))

    assert out.shape == (N, out_ch, H, W), out.shape
    # bf16 matmul operands (f32 accumulate) vs f32 reference: tolerance widened
    # accordingly; still far below any structural-bug-sized error.
    err = float(jnp.max(jnp.abs(out - ref)))
    assert err < 2e-2, err
    print("KERNEL_OK")
</pallas_src>

<mosaic_0001>
module attributes {stable_mosaic.version = 11 : i64} {
  func.func @fused_up_kernel(%arg0: i32, %arg1: memref<1x16x128xf32, #tpu.memory_space<vmem>>, %arg2: memref<2x128xf32, #tpu.memory_space<vmem>>, %arg3: memref<4x128xf32, #tpu.memory_space<vmem>>, %arg4: memref<3x128x128xbf16, #tpu.memory_space<vmem>>, %arg5: memref<3x128x128xbf16, #tpu.memory_space<vmem>>, %arg6: memref<1x16x128xf32, #tpu.memory_space<vmem>>, %arg7: memref<18x128xf32, #tpu.memory_space<vmem>>, %arg8: memref<18x128xf32, #tpu.memory_space<vmem>>) attributes {dimension_semantics = [#tpu.dimension_semantics<parallel>], iteration_bounds = array<i64: 2>, scalar_prefetch = 0 : i64, scratch_operands = 2 : i64, tpu.core_type = #tpu.core_type<tc>, window_params = [{transform_indices = @transform_0, window_bounds = array<i64: 1, 16, 128>}, {pipeline_mode = #tpu.pipeline_mode<synchronous>, transform_indices = @transform_1, window_bounds = array<i64: 2, 128>}, {pipeline_mode = #tpu.pipeline_mode<synchronous>, transform_indices = @transform_2, window_bounds = array<i64: 4, 128>}, {pipeline_mode = #tpu.pipeline_mode<synchronous>, transform_indices = @transform_3, window_bounds = array<i64: 3, 128, 128>}, {pipeline_mode = #tpu.pipeline_mode<synchronous>, transform_indices = @transform_4, window_bounds = array<i64: 3, 128, 128>}, {transform_indices = @transform_5, window_bounds = array<i64: 1, 16, 128>}]} {
    %cst = arith.constant 0.000000e+00 : f32
    %0 = vector.broadcast %cst : f32 to vector<1x128xf32>
    %cst_0 = arith.constant 0.000000e+00 : f32
    %1 = vector.broadcast %cst_0 : f32 to vector<1x128xf32>
    %c0 = arith.constant 0 : index
    %c0_1 = arith.constant 0 : index
    %2 = vector.load %arg7[%c0, %c0_1] : memref<18x128xf32, #tpu.memory_space<vmem>>, vector<1x128xf32>
    tpu.vector_store %arg7[%c0, %c0_1], %0 {strides = array<i32>} : memref<18x128xf32, #tpu.memory_space<vmem>>, vector<1x128xf32>,
    %c17 = arith.constant 17 : index
    %c0_2 = arith.constant 0 : index
    %3 = vector.load %arg7[%c17, %c0_2] : memref<18x128xf32, #tpu.memory_space<vmem>>, vector<1x128xf32>
    tpu.vector_store %arg7[%c17, %c0_2], %0 {strides = array<i32>} : memref<18x128xf32, #tpu.memory_space<vmem>>, vector<1x128xf32>,
    %c0_3 = arith.constant 0 : index
    %c0_4 = arith.constant 0 : index
    %4 = vector.load %arg8[%c0_3, %c0_4] : memref<18x128xf32, #tpu.memory_space<vmem>>, vector<1x128xf32>
    tpu.vector_store %arg8[%c0_3, %c0_4], %1 {strides = array<i32>} : memref<18x128xf32, #tpu.memory_space<vmem>>, vector<1x128xf32>,
    %c17_5 = arith.constant 17 : index
    %c0_6 = arith.constant 0 : index
    %5 = vector.load %arg8[%c17_5, %c0_6] : memref<18x128xf32, #tpu.memory_space<vmem>>, vector<1x128xf32>
    tpu.vector_store %arg8[%c17_5, %c0_6], %1 {strides = array<i32>} : memref<18x128xf32, #tpu.memory_space<vmem>>, vector<1x128xf32>,
    %c0_7 = arith.constant 0 : index
    %c0_8 = arith.constant 0 : index
    %c0_9 = arith.constant 0 : index
    %6 = vector.load %arg1[%c0_7, %c0_8, %c0_9] : memref<1x16x128xf32, #tpu.memory_space<vmem>>, vector<1x16x128xf32>
    %7 = vector.shape_cast %6 : vector<1x16x128xf32> to vector<16x128xf32>
    %c0_10 = arith.constant 0 : index
    %c0_11 = arith.constant 0 : index
    %8 = vector.load %arg2[%c0_10, %c0_11] : memref<2x128xf32, #tpu.memory_space<vmem>>, vector<1x128xf32>
    %9 = vector.broadcast %8 : vector<1x128xf32> to vector<16x128xf32>
    %10 = arith.mulf %7, %9 : vector<16x128xf32>
    %c1 = arith.constant 1 : index
    %c0_12 = arith.constant 0 : index
    %11 = vector.load %arg2[%c1, %c0_12] : memref<2x128xf32, #tpu.memory_space<vmem>>, vector<1x128xf32>
    %12 = vector.broadcast %11 : vector<1x128xf32> to vector<16x128xf32>
    %13 = arith.addf %10, %12 : vector<16x128xf32>
    %c1_13 = arith.constant 1 : index
    %c0_14 = arith.constant 0 : index
    %14 = vector.load %arg7[%c1_13, %c0_14] : memref<18x128xf32, #tpu.memory_space<vmem>>, vector<16x128xf32>
    tpu.vector_store %arg7[%c1_13, %c0_14], %13 {strides = array<i32>} : memref<18x128xf32, #tpu.memory_space<vmem>>, vector<16x128xf32>,
    %c0_15 = arith.constant 0 : index
    %c0_16 = arith.constant 0 : index
    %15 = vector.load %arg7[%c0_15, %c0_16] : memref<18x128xf32, #tpu.memory_space<vmem>>, vector<18x128xf32>
    %16 = arith.truncf %15 : vector<18x128xf32> to vector<18x128xbf16>
    %17 = vector.extract_strided_slice %16 {offsets = [0, 0], sizes = [16, 128], strides = [1, 1]} : vector<18x128xbf16> to vector<16x128xbf16>
    %c0_17 = arith.constant 0 : index
    %c0_18 = arith.constant 0 : index
    %c0_19 = arith.constant 0 : index
    %18 = vector.load %arg4[%c0_17, %c0_18, %c0_19] : memref<3x128x128xbf16, #tpu.memory_space<vmem>>, vector<1x128x128xbf16>
    %19 = vector.shape_cast %18 : vector<1x128x128xbf16> to vector<128x128xbf16>
    %cst_20 = arith.constant dense<0.000000e+00> : vector<16x128xf32>
    %20 = tpu.matmul %17, %19, %cst_20 {dimension_numbers = #tpu.dot_dimension_numbers<[1], [0], [0], [1], [0, 0, 1, 1], [], []>} : vector<16x128xbf16>, vector<128x128xbf16>, vector<16x128xf32> -> vector<16x128xf32>
    %21 = vector.extract_strided_slice %16 {offsets = [1, 0], sizes = [16, 128], strides = [1, 1]} : vector<18x128xbf16> to vector<16x128xbf16>
    %c1_21 = arith.constant 1 : index
    %c0_22 = arith.constant 0 : index
    %c0_23 = arith.constant 0 : index
    %22 = vector.load %arg4[%c1_21, %c0_22, %c0_23] : memref<3x128x128xbf16, #tpu.memory_space<vmem>>, vector<1x128x128xbf16>
    %23 = vector.shape_cast %22 : vector<1x128x128xbf16> to vector<128x128xbf16>
    %cst_24 = arith.constant dense<0.000000e+00> : vector<16x128xf32>
    %24 = tpu.matmul %21, %23, %cst_24 {dimension_numbers = #tpu.dot_dimension_numbers<[1], [0], [0], [1], [0, 0, 1, 1], [], []>} : vector<16x128xbf16>, vector<128x128xbf16>, vector<16x128xf32> -> vector<16x128xf32>
    %25 = arith.addf %20, %24 : vector<16x128xf32>
    %26 = vector.extract_strided_slice %16 {offsets = [2, 0], sizes = [16, 128], strides = [1, 1]} : vector<18x128xbf16> to vector<16x128xbf16>
    %c2 = arith.constant 2 : index
    %c0_25 = arith.constant 0 : index
    %c0_26 = arith.constant 0 : index
    %27 = vector.load %arg4[%c2, %c0_25, %c0_26] : memref<3x128x128xbf16, #tpu.memory_space<vmem>>, vector<1x128x128xbf16>
    %28 = vector.shape_cast %27 : vector<1x128x128xbf16> to vector<128x128xbf16>
    %cst_27 = arith.constant dense<0.000000e+00> : vector<16x128xf32>
    %29 = tpu.matmul %26, %28, %cst_27 {dimension_numbers = #tpu.dot_dimension_numbers<[1], [0], [0], [1], [0, 0, 1, 1], [], []>} : vector<16x128xbf16>, vector<128x128xbf16>, vector<16x128xf32> -> vector<16x128xf32>
    %30 = arith.addf %25, %29 : vector<16x128xf32>
    %c0_28 = arith.constant 0 : index
    %c0_29 = arith.constant 0 : index
    %31 = vector.load %arg3[%c0_28, %c0_29] : memref<4x128xf32, #tpu.memory_space<vmem>>, vector<1x128xf32>
    %32 = vector.broadcast %31 : vector<1x128xf32> to vector<16x128xf32>
    %33 = arith.addf %30, %32 : vector<16x128xf32>
    %c1_30 = arith.constant 1 : index
    %c0_31 = arith.constant 0 : index
    %34 = vector.load %arg3[%c1_30, %c0_31] : memref<4x128xf32, #tpu.memory_space<vmem>>, vector<1x128xf32>
    %cst_32 = arith.constant 0.000000e+00 : f32
    %35 = vector.broadcast %cst_32 : f32 to vector<16x128xf32>
    %36 = arith.cmpf oge, %33, %35 : vector<16x128xf32>
    %37 = vector.broadcast %34 : vector<1x128xf32> to vector<16x128xf32>
    %38 = arith.mulf %37, %33 : vector<16x128xf32>
    %39 = arith.select %36, %33, %38 : vector<16x128xi1>, vector<16x128xf32>
    %c1_33 = arith.constant 1 : index
    %c0_34 = arith.constant 0 : index
    %40 = vector.load %arg8[%c1_33, %c0_34] : memref<18x128xf32, #tpu.memory_space<vmem>>, vector<16x128xf32>
    tpu.vector_store %arg8[%c1_33, %c0_34], %39 {strides = array<i32>} : memref<18x128xf32, #tpu.memory_space<vmem>>, vector<16x128xf32>,
    %c0_35 = arith.constant 0 : index
    %c0_36 = arith.constant 0 : index
    %41 = vector.load %arg8[%c0_35, %c0_36] : memref<18x128xf32, #tpu.memory_space<vmem>>, vector<18x128xf32>
    %42 = arith.truncf %41 : vector<18x128xf32> to vector<18x128xbf16>
    %43 = vector.extract_strided_slice %42 {offsets = [0, 0], sizes = [16, 128], strides = [1, 1]} : vector<18x128xbf16> to vector<16x128xbf16>
    %c0_37 = arith.constant 0 : index
    %c0_38 = arith.constant 0 : index
    %c0_39 = arith.constant 0 : index
    %44 = vector.load %arg5[%c0_37, %c0_38, %c0_39] : memref<3x128x128xbf16, #tpu.memory_space<vmem>>, vector<1x128x128xbf16>
    %45 = vector.shape_cast %44 : vector<1x128x128xbf16> to vector<128x128xbf16>
    %cst_40 = arith.constant dense<0.000000e+00> : vector<16x128xf32>
    %46 = tpu.matmul %43, %45, %cst_40 {dimension_numbers = #tpu.dot_dimension_numbers<[1], [0], [0], [1], [0, 0, 1, 1], [], []>} : vector<16x128xbf16>, vector<128x128xbf16>, vector<16x128xf32> -> vector<16x128xf32>
    %47 = vector.extract_strided_slice %42 {offsets = [1, 0], sizes = [16, 128], strides = [1, 1]} : vector<18x128xbf16> to vector<16x128xbf16>
    %c1_41 = arith.constant 1 : index
    %c0_42 = arith.constant 0 : index
    %c0_43 = arith.constant 0 : index
    %48 = vector.load %arg5[%c1_41, %c0_42, %c0_43] : memref<3x128x128xbf16, #tpu.memory_space<vmem>>, vector<1x128x128xbf16>
    %49 = vector.shape_cast %48 : vector<1x128x128xbf16> to vector<128x128xbf16>
    %cst_44 = arith.constant dense<0.000000e+00> : vector<16x128xf32>
    %50 = tpu.matmul %47, %49, %cst_44 {dimension_numbers = #tpu.dot_dimension_numbers<[1], [0], [0], [1], [0, 0, 1, 1], [], []>} : vector<16x128xbf16>, vector<128x128xbf16>, vector<16x128xf32> -> vector<16x128xf32>
    %51 = arith.addf %46, %50 : vector<16x128xf32>
    %52 = vector.extract_strided_slice %42 {offsets = [2, 0], sizes = [16, 128], strides = [1, 1]} : vector<18x128xbf16> to vector<16x128xbf16>
    %c2_45 = arith.constant 2 : index
    %c0_46 = arith.constant 0 : index
    %c0_47 = arith.constant 0 : index
    %53 = vector.load %arg5[%c2_45, %c0_46, %c0_47] : memref<3x128x128xbf16, #tpu.memory_space<vmem>>, vector<1x128x128xbf16>
    %54 = vector.shape_cast %53 : vector<1x128x128xbf16> to vector<128x128xbf16>
    %cst_48 = arith.constant dense<0.000000e+00> : vector<16x128xf32>
    %55 = tpu.matmul %52, %54, %cst_48 {dimension_numbers = #tpu.dot_dimension_numbers<[1], [0], [0], [1], [0, 0, 1, 1], [], []>} : vector<16x128xbf16>, vector<128x128xbf16>, vector<16x128xf32> -> vector<16x128xf32>
    %56 = arith.addf %51, %55 : vector<16x128xf32>
    %c2_49 = arith.constant 2 : index
    %c0_50 = arith.constant 0 : index
    %57 = vector.load %arg3[%c2_49, %c0_50] : memref<4x128xf32, #tpu.memory_space<vmem>>, vector<1x128xf32>
    %58 = vector.broadcast %57 : vector<1x128xf32> to vector<16x128xf32>
    %59 = arith.addf %56, %58 : vector<16x128xf32>
    %c3 = arith.constant 3 : index
    %c0_51 = arith.constant 0 : index
    %60 = vector.load %arg3[%c3, %c0_51] : memref<4x128xf32, #tpu.memory_space<vmem>>, vector<1x128xf32>
    %cst_52 = arith.constant 0.000000e+00 : f32
    %61 = vector.broadcast %cst_52 : f32 to vector<16x128xf32>
    %62 = arith.cmpf oge, %59, %61 : vector<16x128xf32>
    %63 = vector.broadcast %60 : vector<1x128xf32> to vector<16x128xf32>
    %64 = arith.mulf %63, %59 : vector<16x128xf32>
    %65 = arith.select %62, %59, %64 : vector<16x128xi1>, vector<16x128xf32>
    %c0_53 = arith.constant 0 : index
    %c0_54 = arith.constant 0 : index
    %c0_55 = arith.constant 0 : index
    %66 = vector.load %arg6[%c0_53, %c0_54, %c0_55] : memref<1x16x128xf32, #tpu.memory_space<vmem>>, vector<1x16x128xf32>
    %67 = vector.shape_cast %66 : vector<1x16x128xf32> to vector<16x128xf32>
    %68 = vector.shape_cast %65 : vector<16x128xf32> to vector<1x16x128xf32>
    tpu.vector_store %arg6[%c0_53, %c0_54, %c0_55], %68 {strides = array<i32>} : memref<1x16x128xf32, #tpu.memory_space<vmem>>, vector<1x16x128xf32>,
    return
  }
  func.func @transform_0(%arg0: i32) -> (i32, i32, i32) {
    %c0_i32 = arith.constant 0 : i32
    %c0_i32_0 = arith.constant 0 : i32
    %c0_i32_1 = arith.constant 0 : i32
    return %arg0, %c0_i32, %c0_i32_0 : i32, i32, i32
  }
  func.func @transform_1(%arg0: i32) -> (i32, i32) {
    %c0_i32 = arith.constant 0 : i32
    %c0_i32_0 = arith.constant 0 : i32
    %c0_i32_1 = arith.constant 0 : i32
    return %c0_i32, %c0_i32_0 : i32, i32
  }
  func.func @transform_2(%arg0: i32) -> (i32, i32) {
    %c0_i32 = arith.constant 0 : i32
    %c0_i32_0 = arith.constant 0 : i32
    %c0_i32_1 = arith.constant 0 : i32
    return %c0_i32, %c0_i32_0 : i32, i32
  }
  func.func @transform_3(%arg0: i32) -> (i32, i32, i32) {
    %c0_i32 = arith.constant 0 : i32
    %c0_i32_0 = arith.constant 0 : i32
    %c0_i32_1 = arith.constant 0 : i32
    %c0_i32_2 = arith.constant 0 : i32
    return %c0_i32, %c0_i32_0, %c0_i32_1 : i32, i32, i32
  }
  func.func @transform_4(%arg0: i32) -> (i32, i32, i32) {
    %c0_i32 = arith.constant 0 : i32
    %c0_i32_0 = arith.constant 0 : i32
    %c0_i32_1 = arith.constant 0 : i32
    %c0_i32_2 = arith.constant 0 : i32
    return %c0_i32, %c0_i32_0, %c0_i32_1 : i32, i32, i32
  }
  func.func @transform_5(%arg0: i32) -> (i32, i32, i32) {
    %c0_i32 = arith.constant 0 : i32
    %c0_i32_0 = arith.constant 0 : i32
    %c0_i32_1 = arith.constant 0 : i32
    return %arg0, %c0_i32, %c0_i32_0 : i32, i32, i32
  }
}

</mosaic_0001>

<llo_original>
// kernel: tpu_custom_call.1
$region0: #{tpu_custom_call.1}
  #allocation0 [shape = 'u32[]', space=smem, size = 0x4, offset = 0x4, fixed_abs, tag = 'smem constant byte address 0x4 - core index']
  #allocation1 [shape = 'u32[72,128]{1,0:T(1,128)}', space=vmem, size = 0x9000, scoped, tag = 'internal scratch']
  #allocation2 [shape = 'f32[18,128]{1,0:T(8,128)}', space=vmem, size = 0x3000, scoped, tag = 'scratch operand']
  #allocation3 [shape = 'f32[18,128]{1,0:T(8,128)}', space=vmem, size = 0x3000, scoped, tag = 'scratch operand']
  %s0 = inlined_call_operand.hbm [shape: f32[2,16,128], index: 0, kind: input, shape index: {}]
  %s1 = inlined_call_operand.hbm [shape: f32[2,128], index: 1, kind: input, shape index: {}]
  %s2 = inlined_call_operand.hbm [shape: f32[4,128], index: 2, kind: input, shape index: {}]
  %s3 = inlined_call_operand.hbm [shape: bf16[3,128,128], index: 3, kind: input, shape index: {}]
  %s4 = inlined_call_operand.hbm [shape: bf16[3,128,128], index: 4, kind: input, shape index: {}]
  %s5 = inlined_call_operand.hbm [shape: f32[2,16,128], index: 5, kind: output, shape index: {}]
  %s6 = sld [smem:[#allocation0]]
  $region73: #{tpu_custom_call.1} parent=0
    _
  %s8 = ssub.s32 1, %s6
  %s9 = scalar_select 0, %s8, %s6
  $region1: #{tpu_custom_call.1} parent=0
    #allocation4 [shape = 'u8[16384]{0}', space=vmem, size = 0x4000, scoped, tag = 'input window, operand 0']
    #allocation5 [shape = 's32[2]{0}', space=sflag, size = 0x8, scoped, tag = 'scoped memory for tpu_custom_call.1']
    #allocation6 [shape = 's32[2]{0}', space=sflag, size = 0x8, scoped, tag = 'scoped memory for tpu_custom_call.1']
    #allocation7 [shape = 'u8[1024]{0}', space=vmem, size = 0x400, scoped, tag = 'input window, operand 1, single buffered']
    #allocation8 [shape = 's32[1]{0}', space=sflag, size = 0x4, scoped, tag = 'scoped memory for tpu_custom_call.1']
    #allocation9 [shape = 'u8[2048]{0}', space=vmem, size = 0x800, scoped, tag = 'input window, operand 2, single buffered']
    #allocation10 [shape = 'u8[98304]{0}', space=vmem, size = 0x18000, scoped, tag = 'input window, operand 3, single buffered']
    #allocation11 [shape = 's32[1]{0}', space=sflag, size = 0x4, scoped, tag = 'scoped memory for tpu_custom_call.1']
    #allocation12 [shape = 'u8[98304]{0}', space=vmem, size = 0x18000, scoped, tag = 'input window, operand 4, single buffered']
    #allocation13 [shape = 'u8[16384]{0}', space=vmem, size = 0x4000, scoped, tag = 'output window, operand 0']
    %10 = vsyncpa [#allocation5], 0
    %s11 = scalar_lea.sflag [#allocation5], 1
    %12 = vsyncpa %s11, 0
    %13 = vsyncpa [#allocation8], 0
    %14 = vsyncpa [#allocation11], 0
    %15 = vsyncpa [#allocation6], 0
    %s16 = scalar_lea.sflag [#allocation6], 1
    %17 = vsyncpa %s16, 0
    loop: start=0, step=1, limit=4
    $region2: #{tpu_custom_call.1} parent=1 // loop_pre_header
      _
    $region3: #{tpu_custom_call.1} parent=1 // loop_header
      %s19 = sphi 0, %s23
      %p20 = scmp.ge.s32.totalorder %s19, 4
      %s29 = sphi 0, %s31
      %s32 = sphi 0, %s29
      %s33 = sphi 0, %s32
      %s49 = sphi 0, %s33
      %s53 = sphi 0, %s53
      %s55 = sphi 0, %s53
      %s56 = sphi 0, %s55
      %s70 = sphi 0, %s56
      %s74 = sphi 0, %s74
      %s76 = sphi 0, %s74
      %s77 = sphi 0, %s76
      %s91 = sphi 0, %s77
      %s95 = sphi 0, %s95
      %s97 = sphi 0, %s95
      %s98 = sphi 0, %s97
      %s112 = sphi 0, %s98
      %s116 = sphi 0, %s116
      %s118 = sphi 0, %s116
      %s119 = sphi 0, %s118
      %s133 = sphi 0, %s119
      %s139 = sphi 0, %s141
      %s142 = sphi 0, %s139
      %s143 = sphi 0, %s142
      %s159 = sphi 0, %s143
    $region4: #{tpu_custom_call.1} parent=1 // loop_header_branch
      %22 = sbr.rel (%p20) target = $region8
    $region5: #{tpu_custom_call.1} parent=1 // loop_body
      %s24 = ssub.s32 %s19, 1
      %s25 = ssub.s32 %s19, 2
      %s26 = sadd.s32 %s19, 1
      %s27 = ssub.s32 %s19, %s26
      %p28 = scmp.eq.s32.totalorder %s27, 0
      %s30 = sadd.s32 %s29, 1
      %s31 = scalar_select %p28, %s29, %s30
      %p34 = pneg %p28
      %p35 = scmp.eq.s32.totalorder %s19, 1
      %p36 = por %p34, %p35
      %p37 = scmp.ne.s32.totalorder %s29, %s32
      %p38 = scmp.eq.s32.totalorder %s19, 0
      %p39 = por %p37, %p38
      %p40 = scmp.ne.s32.totalorder %s29, %s32
      %p41 = scmp.eq.s32.totalorder %s24, 1
      %p42 = por %p40, %p41
      %p43 = scmp.ne.s32.totalorder %s32, %s33
      %p44 = scmp.eq.s32.totalorder %s24, 0
      %p45 = por %p43, %p44
      %p46 = scmp.ne.s32.totalorder %s32, %s33
      %p47 = scmp.eq.s32.totalorder %s25, 1
      %p48 = por %p46, %p47
      %p50 = scmp.ne.s32.totalorder %s33, %s49
      %p51 = scmp.eq.s32.totalorder %s25, 0
      %p52 = por %p50, %p51
      %s54 = sadd.s32 %s53, 1
      %p57 = scmp.eq.s32.totalorder %s19, 1
      %p58 = scmp.ne.s32.totalorder %s53, %s55
      %p59 = scmp.eq.s32.totalorder %s19, 0
      %p60 = por %p58, %p59
      %p61 = scmp.ne.s32.totalorder %s53, %s55
      %p62 = scmp.eq.s32.totalorder %s24, 1
      %p63 = por %p61, %p62
      %p64 = scmp.ne.s32.totalorder %s55, %s56
      %p65 = scmp.eq.s32.totalorder %s24, 0
      %p66 = por %p64, %p65
      %p67 = scmp.ne.s32.totalorder %s55, %s56
      %p68 = scmp.eq.s32.totalorder %s25, 1
      %p69 = por %p67, %p68
      %p71 = scmp.ne.s32.totalorder %s56, %s70
      %p72 = scmp.eq.s32.totalorder %s25, 0
      %p73 = por %p71, %p72
      %s75 = sadd.s32 %s74, 1
      %p78 = scmp.eq.s32.totalorder %s19, 1
      %p79 = scmp.ne.s32.totalorder %s74, %s76
      %p80 = scmp.eq.s32.totalorder %s19, 0
      %p81 = por %p79, %p80
      %p82 = scmp.ne.s32.totalorder %s74, %s76
      %p83 = scmp.eq.s32.totalorder %s24, 1
      %p84 = por %p82, %p83
      %p85 = scmp.ne.s32.totalorder %s76, %s77
      %p86 = scmp.eq.s32.totalorder %s24, 0
      %p87 = por %p85, %p86
      %p88 = scmp.ne.s32.totalorder %s76, %s77
      %p89 = scmp.eq.s32.totalorder %s25, 1
      %p90 = por %p88, %p89
      %p92 = scmp.ne.s32.totalorder %s77, %s91
      %p93 = scmp.eq.s32.totalorder %s25, 0
      %p94 = por %p92, %p93
      %s96 = sadd.s32 %s95, 1
      %p99 = scmp.eq.s32.totalorder %s19, 1
      %p100 = scmp.ne.s32.totalorder %s95, %s97
      %p101 = scmp.eq.s32.totalorder %s19, 0
      %p102 = por %p100, %p101
      %p103 = scmp.ne.s32.totalorder %s95, %s97
      %p104 = scmp.eq.s32.totalorder %s24, 1
      %p105 = por %p103, %p104
      %p106 = scmp.ne.s32.totalorder %s97, %s98
      %p107 = scmp.eq.s32.totalorder %s24, 0
      %p108 = por %p106, %p107
      %p109 = scmp.ne.s32.totalorder %s97, %s98
      %p110 = scmp.eq.s32.totalorder %s25, 1
      %p111 = por %p109, %p110
      %p113 = scmp.ne.s32.totalorder %s98, %s112
      %p114 = scmp.eq.s32.totalorder %s25, 0
      %p115 = por %p113, %p114
      %s117 = sadd.s32 %s116, 1
      %p120 = scmp.eq.s32.totalorder %s19, 1
      %p121 = scmp.ne.s32.totalorder %s116, %s118
      %p122 = scmp.eq.s32.totalorder %s19, 0
      %p123 = por %p121, %p122
      %p124 = scmp.ne.s32.totalorder %s116, %s118
      %p125 = scmp.eq.s32.totalorder %s24, 1
      %p126 = por %p124, %p125
      %p127 = scmp.ne.s32.totalorder %s118, %s119
      %p128 = scmp.eq.s32.totalorder %s24, 0
      %p129 = por %p127, %p128
      %p130 = scmp.ne.s32.totalorder %s118, %s119
      %p131 = scmp.eq.s32.totalorder %s25, 1
      %p132 = por %p130, %p131
      %p134 = scmp.ne.s32.totalorder %s119, %s133
      %p135 = scmp.eq.s32.totalorder %s25, 0
      %p136 = por %p134, %p135
      %s137 = ssub.s32 %s19, %s26
      %p138 = scmp.eq.s32.totalorder %s137, 0
      %s140 = sadd.s32 %s139, 1
      %s141 = scalar_select %p138, %s139, %s140
      %p144 = pneg %p138
      %p145 = scmp.eq.s32.totalorder %s19, 1
      %p146 = por %p144, %p145
      %p147 = scmp.ne.s32.totalorder %s139, %s142
      %p148 = scmp.eq.s32.totalorder %s19, 0
      %p149 = por %p147, %p148
      %p150 = scmp.ne.s32.totalorder %s139, %s142
      %p151 = scmp.eq.s32.totalorder %s24, 1
      %p152 = por %p150, %p151
      %p153 = scmp.ne.s32.totalorder %s142, %s143
      %p154 = scmp.eq.s32.totalorder %s24, 0
      %p155 = por %p153, %p154
      %p156 = scmp.ne.s32.totalorder %s142, %s143
      %p157 = scmp.eq.s32.totalorder %s25, 1
      %p158 = por %p156, %p157
      %p160 = scmp.ne.s32.totalorder %s143, %s159
      %p161 = scmp.eq.s32.totalorder %s25, 0
      %p162 = por %p160, %p161
      %p163 = scmp.le.s32.totalorder 1, %s19
      %p164 = scmp.lt.s32.totalorder %s19, 3
      %p165 = pnand %p163, %p164
      %p166 = pneg %p165
      // Predicated region
      $region9: #{tpu_custom_call.1} parent=5 // pred_check
        _
      $region10: #{tpu_custom_call.1} parent=5 // pred_check_branch
        %168 = sbr.rel (%p165) target = $region12
      $region11: #{tpu_custom_call.1} parent=5 // pred_region
        %s169 = ssub.s32 %s19, 1
        // Predicated region
        $region13: #{tpu_custom_call.1} parent=11 // pred_check
          %p170 = pneg %p66
        $region14: #{tpu_custom_call.1} parent=11 // pred_check_branch
          %172 = sbr.rel (%p170) target = $region16
        $region15: #{tpu_custom_call.1} parent=11 // pred_region
          %174 = vsyncadd [#allocation8], 0
          %s176 = sshll.u32 %s1, 4
          %s177 = int_to_ptr.hbm [resolvable:$true] %s176
          %s178 = sshll.u32 [#allocation7], 4
          %s179 = int_to_ptr.vmem [resolvable:$true] %s178
          %181 = dma.hbm_to_vmem [thread:$0]  %s177, 32, %s179, [#allocation8]
        $region16: #{tpu_custom_call.1} parent=11 // pred_fallthru
          _
        // Predicated region
        $region17: #{tpu_custom_call.1} parent=11 // pred_check
          %p182 = pneg %p87
        $region18: #{tpu_custom_call.1} parent=11 // pred_check_branch
          %184 = sbr.rel (%p182) target = $region20
        $region19: #{tpu_custom_call.1} parent=11 // pred_region
          %186 = vsyncadd [#allocation8], 0
          %s188 = sshll.u32 %s2, 4
          %s189 = int_to_ptr.hbm [resolvable:$true] %s188
          %s190 = sshll.u32 [#allocation9], 4
          %s191 = int_to_ptr.vmem [resolvable:$true] %s190
          %193 = dma.hbm_to_vmem [thread:$0]  %s189, 64, %s191, [#allocation8]
        $region20: #{tpu_custom_call.1} parent=11 // pred_fallthru
          _
        // Predicated region
        $region21: #{tpu_custom_call.1} parent=11 // pred_check
          %p194 = pneg %p108
        $region22: #{tpu_custom_call.1} parent=11 // pred_check_branch
          %196 = sbr.rel (%p194) target = $region24
        $region23: #{tpu_custom_call.1} parent=11 // pred_region
          %198 = vsyncadd [#allocation11], 0
          %s199 = sshll.u32 %s3, 4
          %s200 = int_to_ptr.hbm [resolvable:$true] %s199
          %s201 = sshll.u32 [#allocation10], 4
          %s202 = int_to_ptr.vmem [resolvable:$true] %s201
          %207 = dma.hbm_to_vmem [thread:$0]  %s200, 3072, %s202, [#allocation11], 64, 64, 4
        $region24: #{tpu_custom_call.1} parent=11 // pred_fallthru
          _
        // Predicated region
        $region25: #{tpu_custom_call.1} parent=11 // pred_check
          %p208 = pneg %p129
        $region26: #{tpu_custom_call.1} parent=11 // pred_check_branch
          %210 = sbr.rel (%p208) target = $region28
        $region27: #{tpu_custom_call.1} parent=11 // pred_region
          %212 = vsyncadd [#allocation11], 0
          %s213 = sshll.u32 %s4, 4
          %s214 = int_to_ptr.hbm [resolvable:$true] %s213
          %s215 = sshll.u32 [#allocation12], 4
          %s216 = int_to_ptr.vmem [resolvable:$true] %s215
          %221 = dma.hbm_to_vmem [thread:$0]  %s214, 3072, %s216, [#allocation11], 64, 64, 4
        $region28: #{tpu_custom_call.1} parent=11 // pred_fallthru
          _
      $region12: #{tpu_custom_call.1} parent=5 // pred_fallthru
        _
      %p222 = scmp.lt.s32.totalorder %s19, 2
      // Predicated region
      $region29: #{tpu_custom_call.1} parent=5 // pred_check
        %p223 = pneg %p222
      $region30: #{tpu_custom_call.1} parent=5 // pred_check_branch
        %225 = sbr.rel (%p223) target = $region32
      $region31: #{tpu_custom_call.1} parent=5 // pred_region
        // Predicated region
        $region33: #{tpu_custom_call.1} parent=31 // pred_check
          %p226 = pneg %p39
        $region34: #{tpu_custom_call.1} parent=31 // pred_check_branch
          %228 = sbr.rel (%p226) target = $region36
        $region35: #{tpu_custom_call.1} parent=31 // pred_region
          %s229 = sand.u32 %s29, 1
          %s230 = scalar_lea.sflag [#allocation5], %s229
          %s231 = sand.u32 %s29, 1
          %s232 = smul.addr %s231, 16
          %s233 = scalar_lea.vmem [#allocation4], %s232
          %235 = vsyncadd %s230, 0
          %s236 = smul.addr %s19, 2
          %s237 = smul.addr %s236, 8
          %s238 = scalar_lea.hbm %s0, %s237
          %s239 = sshll.u32 %s238, 4
          %s240 = int_to_ptr.hbm [resolvable:$true] %s239
          %s241 = sshll.u32 %s233, 4
          %s242 = int_to_ptr.vmem [resolvable:$true] %s241
          %247 = dma.hbm_to_vmem [thread:$0]  %s240, 256, %s242, %s230, 128, 128, 8
        $region36: #{tpu_custom_call.1} parent=31 // pred_fallthru
          _
      $region32: #{tpu_custom_call.1} parent=5 // pred_fallthru
        _
      %p248 = scmp.le.s32.totalorder 1, %s19
      %p249 = scmp.lt.s32.totalorder %s19, 3
      %p250 = pnand %p248, %p249
      %p251 = pneg %p250
      // Predicated region
      $region37: #{tpu_custom_call.1} parent=5 // pred_check
        _
      $region38: #{tpu_custom_call.1} parent=5 // pred_check_branch
        %253 = sbr.rel (%p250) target = $region40
      $region39: #{tpu_custom_call.1} parent=5 // pred_region
        %s254 = ssub.s32 %s19, 1
        %s255 = sand.u32 %s32, 1
        %s256 = scalar_lea.sflag [#allocation5], %s255
        %s257 = sand.u32 %s32, 1
        %s258 = smul.addr %s257, 16
        %s259 = scalar_lea.vmem [#allocation4], %s258
        // Predicated region
        $region41: #{tpu_custom_call.1} parent=39 // pred_check
          %p260 = pneg %p45
        $region42: #{tpu_custom_call.1} parent=39 // pred_check_branch
          %262 = sbr.rel (%p260) target = $region44
        $region43: #{tpu_custom_call.1} parent=39 // pred_region
          %264 = dma.done %s256, 256
        $region44: #{tpu_custom_call.1} parent=39 // pred_fallthru
          _
        // Predicated region
        $region45: #{tpu_custom_call.1} parent=39 // pred_check
          %p265 = pneg %p66
        $region46: #{tpu_custom_call.1} parent=39 // pred_check_branch
          %267 = sbr.rel (%p265) target = $region48
        $region47: #{tpu_custom_call.1} parent=39 // pred_region
          %269 = dma.done [#allocation8], 32
        $region48: #{tpu_custom_call.1} parent=39 // pred_fallthru
          _
        // Predicated region
        $region49: #{tpu_custom_call.1} parent=39 // pred_check
          %p270 = pneg %p87
        $region50: #{tpu_custom_call.1} parent=39 // pred_check_branch
          %272 = sbr.rel (%p270) target = $region52
        $region51: #{tpu_custom_call.1} parent=39 // pred_region
          %274 = dma.done [#allocation8], 64
        $region52: #{tpu_custom_call.1} parent=39 // pred_fallthru
          _
        // Predicated region
        $region53: #{tpu_custom_call.1} parent=39 // pred_check
          %p275 = pneg %p108
        $region54: #{tpu_custom_call.1} parent=39 // pred_check_branch
          %277 = sbr.rel (%p275) target = $region56
        $region55: #{tpu_custom_call.1} parent=39 // pred_region
          %279 = dma.done [#allocation11], 3072
        $region56: #{tpu_custom_call.1} parent=39 // pred_fallthru
          _
        // Predicated region
        $region57: #{tpu_custom_call.1} parent=39 // pred_check
          %p280 = pneg %p129
        $region58: #{tpu_custom_call.1} parent=39 // pred_check_branch
          %282 = sbr.rel (%p280) target = $region60
        $region59: #{tpu_custom_call.1} parent=39 // pred_region
          %284 = dma.done [#allocation11], 3072
        $region60: #{tpu_custom_call.1} parent=39 // pred_fallthru
          _
        %s285 = sand.u32 %s32, 1
        %s286 = scalar_lea.sflag [#allocation5], %s285
        %s287 = sand.u32 %s32, 1
        %s288 = smul.addr %s287, 16
        %s289 = scalar_lea.vmem [#allocation4], %s288
        %p290 = pneg %p45
        %p291 = pneg %p42
        %p292 = pneg %p66
        %p293 = pneg %p63
        %p294 = pneg %p87
        %p295 = pneg %p84
        %p296 = pneg %p108
        %p297 = pneg %p105
        %p298 = pneg %p129
        %p299 = pneg %p126
        %p300 = pneg %p155
        %p301 = pneg %p152
        %s302 = sand.u32 %s142, 1
        %s303 = scalar_lea.sflag [#allocation6], %s302
        %s304 = sand.u32 %s142, 1
        %s305 = smul.addr %s304, 16
        %s306 = scalar_lea.vmem [#allocation13], %s305
        %307 = vst [vmem:[#allocation2] sm:$0x1] 0.0
        %308 = vst [vmem:[#allocation2 + $0x11] sm:$0x1] 0.0
        %309 = vst [vmem:[#allocation3] sm:$0x1] 0.0
        %310 = vst [vmem:[#allocation3 + $0x11] sm:$0x1] 0.0
        %v311 = vld [vmem:[%s259] sm:$0xff]
        %v312 = vld [vmem:[%s259 + $0x8] sm:$0xff]
        %v313 = vld [vmem:[#allocation7] sm:$0x1]
        %v314 = vperm.slane %v313, 0
        %v315 = vmul.f32 %v311, %v314
        %v316 = vmul.f32 %v312, %v314
        %v317 = vld [vmem:[#allocation7 + $0x1] sm:$0x1]
        %v318 = vperm.slane %v317, 0
        %v319 = vadd.f32 %v315, %v318
        %v320 = vadd.f32 %v316, %v318
        %321 = vst [vmem:[#allocation2 + $0x1] sm:$0xff] %v319
        %322 = vst [vmem:[#allocation2 + $0x9] sm:$0xff] %v320
        %v323 = vld [vmem:[#allocation2] sm:$0xff]
        %v324 = vld [vmem:[#allocation2 + $0x8] sm:$0xff]
        %v325 = vld [vmem:[#allocation2 + $0x10] sm:$0x3]
        %v326 = vpack.c.bf16 %v323, %v323
        %v327 = vpack.c.bf16 %v324, %v324
        %v328 = vpack.c.bf16 %v325, %v325
        %v329 = vld [vmem:[#allocation10] sm:$0xf]
        %v330 = vld [vmem:[#allocation10 + $0x4] sm:$0xf]
        %v331 = vld [vmem:[#allocation10 + $0x8] sm:$0xf]
        %v332 = vld [vmem:[#allocation10 + $0xc] sm:$0xf]
        %v333 = vld [vmem:[#allocation10 + $0x10] sm:$0xf]
        %v334 = vld [vmem:[#allocation10 + $0x14] sm:$0xf]
        %v335 = vld [vmem:[#allocation10 + $0x18] sm:$0xf]
        %v336 = vld [vmem:[#allocation10 + $0x1c] sm:$0xf]
        %v337 = vld [vmem:[#allocation10 + $0x20] sm:$0xf]
        %v338 = vld [vmem:[#allocation10 + $0x24] sm:$0xf]
        %v339 = vld [vmem:[#allocation10 + $0x28] sm:$0xf]
        %v340 = vld [vmem:[#allocation10 + $0x2c] sm:$0xf]
        %v341 = vld [vmem:[#allocation10 + $0x30] sm:$0xf]
        %v342 = vld [vmem:[#allocation10 + $0x34] sm:$0xf]
        %v343 = vld [vmem:[#allocation10 + $0x38] sm:$0xf]
        %v344 = vld [vmem:[#allocation10 + $0x3c] sm:$0xf]
        %s345 = scalar_lea.vmem [#allocation10], 64
        %v346 = vld [vmem:[%s345] sm:$0xf]
        %v347 = vld [vmem:[%s345 + $0x4] sm:$0xf]
        %v348 = vld [vmem:[%s345 + $0x8] sm:$0xf]
        %v349 = vld [vmem:[%s345 + $0xc] sm:$0xf]
        %v350 = vld [vmem:[%s345 + $0x10] sm:$0xf]
        %v351 = vld [vmem:[%s345 + $0x14] sm:$0xf]
        %v352 = vld [vmem:[%s345 + $0x18] sm:$0xf]
        %v353 = vld [vmem:[%s345 + $0x1c] sm:$0xf]
        %v354 = vld [vmem:[%s345 + $0x20] sm:$0xf]
        %v355 = vld [vmem:[%s345 + $0x24] sm:$0xf]
        %v356 = vld [vmem:[%s345 + $0x28] sm:$0xf]
        %v357 = vld [vmem:[%s345 + $0x2c] sm:$0xf]
        %v358 = vld [vmem:[%s345 + $0x30] sm:$0xf]
        %v359 = vld [vmem:[%s345 + $0x34] sm:$0xf]
        %v360 = vld [vmem:[%s345 + $0x38] sm:$0xf]
        %v361 = vld [vmem:[%s345 + $0x3c] sm:$0xf]
        %v365 = vunpack.c.l.b16 %v326
        %v366 = vunpack.c.l.b16 %v327
        %v367 = vunpack.c.l.b16 %v328
        %v368 = vpack.c.b16 %v366, %v365
        %v369 = vpack.c.b16 %v367, %v367
        %vm370 = vsmask.f32 7424
        %v372 = vshrl.u32 %v368, 16
        %v374 = vshll.u32 %v368, 16
        %v376 = vrot.slane %v374, 1
        %v377 = vor.u32 %v372, %v376
        %v379 = vshll.u32 %v369, 16
        %v381 = vrot.slane %v379, 1
        %v382 = vsel %vm370, %v377, %v381
        %v400 = vunpack.c.l.b16 %v346
        %v401 = vunpack.c.l.b16 %v347
        %v402 = vunpack.c.l.b16 %v348
        %v403 = vunpack.c.l.b16 %v349
        %v404 = vunpack.c.l.b16 %v350
        %v405 = vunpack.c.l.b16 %v351
        %v406 = vunpack.c.l.b16 %v352
        %v407 = vunpack.c.l.b16 %v353
        %v408 = vunpack.c.l.b16 %v354
        %v409 = vunpack.c.l.b16 %v355
        %v410 = vunpack.c.l.b16 %v356
        %v411 = vunpack.c.l.b16 %v357
        %v412 = vunpack.c.l.b16 %v358
        %v413 = vunpack.c.l.b16 %v359
        %v414 = vunpack.c.l.b16 %v360
        %v415 = vunpack.c.l.b16 %v361
        %v416 = vpack.c.b16 %v401, %v400
        %v417 = vpack.c.b16 %v403, %v402
        %v418 = vpack.c.b16 %v405, %v404
        %v419 = vpack.c.b16 %v407, %v406
        %v420 = vpack.c.b16 %v409, %v408
        %v421 = vpack.c.b16 %v411, %v410
        %v422 = vpack.c.b16 %v413, %v412
        %v423 = vpack.c.b16 %v415, %v414
        %432 = vmatpush.bf16.msra.mxu0 %v423
        %433 = vmatpush.bf16.msra.mxu0 %v422
        %434 = vmatpush.bf16.msra.mxu0 %v421
        %435 = vmatpush.bf16.msra.mxu0 %v420
        %436 = vmatpush.bf16.msra.mxu0 %v419
        %437 = vmatpush.bf16.msra.mxu0 %v418
        %438 = vmatpush.bf16.msra.mxu0 %v417
        %439 = vmatpush.bf16.msra.mxu0 %v416
        %440 = vmatmul.bf16.gmra.mxu0 %v382
        %v441 = vpop.f32.mrf.mxu0
        %v442 = vadd.f32 0.0, %v441
        %v443 = vpop.f32.mrf.mxu0
        %v444 = vadd.f32 0.0, %v443
        %445 = vdwg.mxu0
        %v463 = vunpack.c.l.b16 %v329
        %v464 = vunpack.c.l.b16 %v330
        %v465 = vunpack.c.l.b16 %v331
        %v466 = vunpack.c.l.b16 %v332
        %v467 = vunpack.c.l.b16 %v333
        %v468 = vunpack.c.l.b16 %v334
        %v469 = vunpack.c.l.b16 %v335
        %v470 = vunpack.c.l.b16 %v336
        %v471 = vunpack.c.l.b16 %v337
        %v472 = vunpack.c.l.b16 %v338
        %v473 = vunpack.c.l.b16 %v339
        %v474 = vunpack.c.l.b16 %v340
        %v475 = vunpack.c.l.b16 %v341
        %v476 = vunpack.c.l.b16 %v342
        %v477 = vunpack.c.l.b16 %v343
        %v478 = vunpack.c.l.b16 %v344
        %v479 = vpack.c.b16 %v464, %v463
        %v480 = vpack.c.b16 %v466, %v465
        %v481 = vpack.c.b16 %v468, %v467
        %v482 = vpack.c.b16 %v470, %v469
        %v483 = vpack.c.b16 %v472, %v471
        %v484 = vpack.c.b16 %v474, %v473
        %v485 = vpack.c.b16 %v476, %v475
        %v486 = vpack.c.b16 %v478, %v477
        %495 = vmatpush.bf16.msra.mxu0 %v486
        %496 = vmatpush.bf16.msra.mxu0 %v485
        %497 = vmatpush.bf16.msra.mxu0 %v484
        %498 = vmatpush.bf16.msra.mxu0 %v483
        %499 = vmatpush.bf16.msra.mxu0 %v482
        %500 = vmatpush.bf16.msra.mxu0 %v481
        %501 = vmatpush.bf16.msra.mxu0 %v480
        %502 = vmatpush.bf16.msra.mxu0 %v479
        %503 = vmatmul.bf16.gmra.mxu0 %v368
        %v504 = vpop.f32.mrf.mxu0
        %v505 = vadd.f32 %v442, %v504
        %v506 = vpop.f32.mrf.mxu0
        %v507 = vadd.f32 %v444, %v506
        %508 = vdwg.mxu0
        %s509 = scalar_lea.vmem [#allocation10], 128
        %v510 = vld [vmem:[%s509] sm:$0xf]
        %v511 = vld [vmem:[%s509 + $0x4] sm:$0xf]
        %v512 = vld [vmem:[%s509 + $0x8] sm:$0xf]
        %v513 = vld [vmem:[%s509 + $0xc] sm:$0xf]
        %v514 = vld [vmem:[%s509 + $0x10] sm:$0xf]
        %v515 = vld [vmem:[%s509 + $0x14] sm:$0xf]
        %v516 = vld [vmem:[%s509 + $0x18] sm:$0xf]
        %v517 = vld [vmem:[%s509 + $0x1c] sm:$0xf]
        %v518 = vld [vmem:[%s509 + $0x20] sm:$0xf]
        %v519 = vld [vmem:[%s509 + $0x24] sm:$0xf]
        %v520 = vld [vmem:[%s509 + $0x28] sm:$0xf]
        %v521 = vld [vmem:[%s509 + $0x2c] sm:$0xf]
        %v522 = vld [vmem:[%s509 + $0x30] sm:$0xf]
        %v523 = vld [vmem:[%s509 + $0x34] sm:$0xf]
        %v524 = vld [vmem:[%s509 + $0x38] sm:$0xf]
        %v525 = vld [vmem:[%s509 + $0x3c] sm:$0xf]
        %vm526 = vcmask 1046528
        %v527 = vrot.slane %v368, 1
        %v528 = vrot.slane %v369, 1
        %v529 = vsel %vm526, %v527, %v528
        %v547 = vunpack.c.l.b16 %v510
        %v548 = vunpack.c.l.b16 %v511
        %v549 = vunpack.c.l.b16 %v512
        %v550 = vunpack.c.l.b16 %v513
        %v551 = vunpack.c.l.b16 %v514
        %v552 = vunpack.c.l.b16 %v515
        %v553 = vunpack.c.l.b16 %v516
        %v554 = vunpack.c.l.b16 %v517
        %v555 = vunpack.c.l.b16 %v518
        %v556 = vunpack.c.l.b16 %v519
        %v557 = vunpack.c.l.b16 %v520
        %v558 = vunpack.c.l.b16 %v521
        %v559 = vunpack.c.l.b16 %v522
        %v560 = vunpack.c.l.b16 %v523
        %v561 = vunpack.c.l.b16 %v524
        %v562 = vunpack.c.l.b16 %v525
        %v563 = vpack.c.b16 %v548, %v547
        %v564 = vpack.c.b16 %v550, %v549
        %v565 = vpack.c.b16 %v552, %v551
        %v566 = vpack.c.b16 %v554, %v553
        %v567 = vpack.c.b16 %v556, %v555
        %v568 = vpack.c.b16 %v558, %v557
        %v569 = vpack.c.b16 %v560, %v559
        %v570 = vpack.c.b16 %v562, %v561
        %579 = vmatpush.bf16.msra.mxu0 %v570
        %580 = vmatpush.bf16.msra.mxu0 %v569
        %581 = vmatpush.bf16.msra.mxu0 %v568
        %582 = vmatpush.bf16.msra.mxu0 %v567
        %583 = vmatpush.bf16.msra.mxu0 %v566
        %584 = vmatpush.bf16.msra.mxu0 %v565
        %585 = vmatpush.bf16.msra.mxu0 %v564
        %586 = vmatpush.bf16.msra.mxu0 %v563
        %587 = vmatmul.bf16.gmra.mxu0 %v529
        %v588 = vpop.f32.mrf.mxu0
        %v589 = vadd.f32 0.0, %v588
        %v590 = vpop.f32.mrf.mxu0
        %v591 = vadd.f32 0.0, %v590
        %592 = vdwg.mxu0
        %v593 = vadd.f32 %v505, %v589
        %v594 = vadd.f32 %v507, %v591
        %v595 = vld [vmem:[#allocation9] sm:$0x1]
        %v596 = vperm.slane %v595, 0
        %v597 = vadd.f32 %v593, %v596
        %v598 = vadd.f32 %v594, %v596
        %v599 = vld [vmem:[#allocation9 + $0x1] sm:$0x1]
        %vm600 = vcmp.ge.f32.partialorder %v597, 0.0
        %vm601 = vcmp.ge.f32.partialorder %v598, 0.0
        %v602 = vperm.slane %v599, 0
        %v603 = vmul.f32 %v602, %v597
        %v604 = vmul.f32 %v602, %v598
        %v605 = vsel %vm600, %v597, %v603
        %v606 = vsel %vm601, %v598, %v604
        %607 = vst [vmem:[#allocation3 + $0x1] sm:$0xff] %v605
        %608 = vst [vmem:[#allocation3 + $0x9] sm:$0xff] %v606
        %v609 = vld [vmem:[#allocation3] sm:$0xff]
        %v610 = vld [vmem:[#allocation3 + $0x8] sm:$0xff]
        %v611 = vld [vmem:[#allocation3 + $0x10] sm:$0x3]
        %v612 = vpack.c.bf16 %v609, %v609
        %v613 = vpack.c.bf16 %v610, %v610
        %v614 = vpack.c.bf16 %v611, %v611
        %v615 = vld [vmem:[#allocation12] sm:$0xf]
        %v616 = vld [vmem:[#allocation12 + $0x4] sm:$0xf]
        %v617 = vld [vmem:[#allocation12 + $0x8] sm:$0xf]
        %v618 = vld [vmem:[#allocation12 + $0xc] sm:$0xf]
        %v619 = vld [vmem:[#allocation12 + $0x10] sm:$0xf]
        %v620 = vld [vmem:[#allocation12 + $0x14] sm:$0xf]
        %v621 = vld [vmem:[#allocation12 + $0x18] sm:$0xf]
        %v622 = vld [vmem:[#allocation12 + $0x1c] sm:$0xf]
        %v623 = vld [vmem:[#allocation12 + $0x20] sm:$0xf]
        %v624 = vld [vmem:[#allocation12 + $0x24] sm:$0xf]
        %v625 = vld [vmem:[#allocation12 + $0x28] sm:$0xf]
        %v626 = vld [vmem:[#allocation12 + $0x2c] sm:$0xf]
        %v627 = vld [vmem:[#allocation12 + $0x30] sm:$0xf]
        %v628 = vld [vmem:[#allocation12 + $0x34] sm:$0xf]
        %v629 = vld [vmem:[#allocation12 + $0x38] sm:$0xf]
        %v630 = vld [vmem:[#allocation12 + $0x3c] sm:$0xf]
        %s631 = scalar_lea.vmem [#allocation12], 64
        %v632 = vld [vmem:[%s631] sm:$0xf]
        %v633 = vld [vmem:[%s631 + $0x4] sm:$0xf]
        %v634 = vld [vmem:[%s631 + $0x8] sm:$0xf]
        %v635 = vld [vmem:[%s631 + $0xc] sm:$0xf]
        %v636 = vld [vmem:[%s631 + $0x10] sm:$0xf]
        %v637 = vld [vmem:[%s631 + $0x14] sm:$0xf]
        %v638 = vld [vmem:[%s631 + $0x18] sm:$0xf]
        %v639 = vld [vmem:[%s631 + $0x1c] sm:$0xf]
        %v640 = vld [vmem:[%s631 + $0x20] sm:$0xf]
        %v641 = vld [vmem:[%s631 + $0x24] sm:$0xf]
        %v642 = vld [vmem:[%s631 + $0x28] sm:$0xf]
        %v643 = vld [vmem:[%s631 + $0x2c] sm:$0xf]
        %v644 = vld [vmem:[%s631 + $0x30] sm:$0xf]
        %v645 = vld [vmem:[%s631 + $0x34] sm:$0xf]
        %v646 = vld [vmem:[%s631 + $0x38] sm:$0xf]
        %v647 = vld [vmem:[%s631 + $0x3c] sm:$0xf]
        %v651 = vunpack.c.l.b16 %v612
        %v652 = vunpack.c.l.b16 %v613
        %v653 = vunpack.c.l.b16 %v614
        %v654 = vpack.c.b16 %v652, %v651
        %v655 = vpack.c.b16 %v653, %v653
        %v657 = vshrl.u32 %v654, 16
        %v659 = vshll.u32 %v654, 16
        %v661 = vrot.slane %v659, 1
        %v662 = vor.u32 %v657, %v661
        %v664 = vshll.u32 %v655, 16
        %v666 = vrot.slane %v664, 1
        %v667 = vsel %vm370, %v662, %v666
        %v685 = vunpack.c.l.b16 %v632
        %v686 = vunpack.c.l.b16 %v633
        %v687 = vunpack.c.l.b16 %v634
        %v688 = vunpack.c.l.b16 %v635
        %v689 = vunpack.c.l.b16 %v636
        %v690 = vunpack.c.l.b16 %v637
        %v691 = vunpack.c.l.b16 %v638
        %v692 = vunpack.c.l.b16 %v639
        %v693 = vunpack.c.l.b16 %v640
        %v694 = vunpack.c.l.b16 %v641
        %v695 = vunpack.c.l.b16 %v642
        %v696 = vunpack.c.l.b16 %v643
        %v697 = vunpack.c.l.b16 %v644
        %v698 = vunpack.c.l.b16 %v645
        %v699 = vunpack.c.l.b16 %v646
        %v700 = vunpack.c.l.b16 %v647
        %v701 = vpack.c.b16 %v686, %v685
        %v702 = vpack.c.b16 %v688, %v687
        %v703 = vpack.c.b16 %v690, %v689
        %v704 = vpack.c.b16 %v692, %v691
        %v705 = vpack.c.b16 %v694, %v693
        %v706 = vpack.c.b16 %v696, %v695
        %v707 = vpack.c.b16 %v698, %v697
        %v708 = vpack.c.b16 %v700, %v699
        %717 = vmatpush.bf16.msra.mxu0 %v708
        %718 = vmatpush.bf16.msra.mxu0 %v707
        %719 = vmatpush.bf16.msra.mxu0 %v706
        %720 = vmatpush.bf16.msra.mxu0 %v705
        %721 = vmatpush.bf16.msra.mxu0 %v704
        %722 = vmatpush.bf16.msra.mxu0 %v703
        %723 = vmatpush.bf16.msra.mxu0 %v702
        %724 = vmatpush.bf16.msra.mxu0 %v701
        %725 = vmatmul.bf16.gmra.mxu0 %v667
        %v726 = vpop.f32.mrf.mxu0
        %v727 = vadd.f32 0.0, %v726
        %v728 = vpop.f32.mrf.mxu0
        %v729 = vadd.f32 0.0, %v728
        %730 = vdwg.mxu0
        %v748 = vunpack.c.l.b16 %v615
        %v749 = vunpack.c.l.b16 %v616
        %v750 = vunpack.c.l.b16 %v617
        %v751 = vunpack.c.l.b16 %v618
        %v752 = vunpack.c.l.b16 %v619
        %v753 = vunpack.c.l.b16 %v620
        %v754 = vunpack.c.l.b16 %v621
        %v755 = vunpack.c.l.b16 %v622
        %v756 = vunpack.c.l.b16 %v623
        %v757 = vunpack.c.l.b16 %v624
        %v758 = vunpack.c.l.b16 %v625
        %v759 = vunpack.c.l.b16 %v626
        %v760 = vunpack.c.l.b16 %v627
        %v761 = vunpack.c.l.b16 %v628
        %v762 = vunpack.c.l.b16 %v629
        %v763 = vunpack.c.l.b16 %v630
        %v764 = vpack.c.b16 %v749, %v748
        %v765 = vpack.c.b16 %v751, %v750
        %v766 = vpack.c.b16 %v753, %v752
        %v767 = vpack.c.b16 %v755, %v754
        %v768 = vpack.c.b16 %v757, %v756
        %v769 = vpack.c.b16 %v759, %v758
        %v770 = vpack.c.b16 %v761, %v760
        %v771 = vpack.c.b16 %v763, %v762
        %780 = vmatpush.bf16.msra.mxu0 %v771
        %781 = vmatpush.bf16.msra.mxu0 %v770
        %782 = vmatpush.bf16.msra.mxu0 %v769
        %783 = vmatpush.bf16.msra.mxu0 %v768
        %784 = vmatpush.bf16.msra.mxu0 %v767
        %785 = vmatpush.bf16.msra.mxu0 %v766
        %786 = vmatpush.bf16.msra.mxu0 %v765
        %787 = vmatpush.bf16.msra.mxu0 %v764
        %788 = vmatmul.bf16.gmra.mxu0 %v654
        %v789 = vpop.f32.mrf.mxu0
        %v790 = vadd.f32 %v727, %v789
        %v791 = vpop.f32.mrf.mxu0
        %v792 = vadd.f32 %v729, %v791
        %793 = vdwg.mxu0
        %s794 = scalar_lea.vmem [#allocation12], 128
        %v795 = vld [vmem:[%s794] sm:$0xf]
        %v796 = vld [vmem:[%s794 + $0x4] sm:$0xf]
        %v797 = vld [vmem:[%s794 + $0x8] sm:$0xf]
        %v798 = vld [vmem:[%s794 + $0xc] sm:$0xf]
        %v799 = vld [vmem:[%s794 + $0x10] sm:$0xf]
        %v800 = vld [vmem:[%s794 + $0x14] sm:$0xf]
        %v801 = vld [vmem:[%s794 + $0x18] sm:$0xf]
        %v802 = vld [vmem:[%s794 + $0x1c] sm:$0xf]
        %v803 = vld [vmem:[%s794 + $0x20] sm:$0xf]
        %v804 = vld [vmem:[%s794 + $0x24] sm:$0xf]
        %v805 = vld [vmem:[%s794 + $0x28] sm:$0xf]
        %v806 = vld [vmem:[%s794 + $0x2c] sm:$0xf]
        %v807 = vld [vmem:[%s794 + $0x30] sm:$0xf]
        %v808 = vld [vmem:[%s794 + $0x34] sm:$0xf]
        %v809 = vld [vmem:[%s794 + $0x38] sm:$0xf]
        %v810 = vld [vmem:[%s794 + $0x3c] sm:$0xf]
        %v811 = vrot.slane %v654, 1
        %v812 = vrot.slane %v655, 1
        %v813 = vsel %vm526, %v811, %v812
        %v831 = vunpack.c.l.b16 %v795
        %v832 = vunpack.c.l.b16 %v796
        %v833 = vunpack.c.l.b16 %v797
        %v834 = vunpack.c.l.b16 %v798
        %v835 = vunpack.c.l.b16 %v799
        %v836 = vunpack.c.l.b16 %v800
        %v837 = vunpack.c.l.b16 %v801
        %v838 = vunpack.c.l.b16 %v802
        %v839 = vunpack.c.l.b16 %v803
        %v840 = vunpack.c.l.b16 %v804
        %v841 = vunpack.c.l.b16 %v805
        %v842 = vunpack.c.l.b16 %v806
        %v843 = vunpack.c.l.b16 %v807
        %v844 = vunpack.c.l.b16 %v808
        %v845 = vunpack.c.l.b16 %v809
        %v846 = vunpack.c.l.b16 %v810
        %v847 = vpack.c.b16 %v832, %v831
        %v848 = vpack.c.b16 %v834, %v833
        %v849 = vpack.c.b16 %v836, %v835
        %v850 = vpack.c.b16 %v838, %v837
        %v851 = vpack.c.b16 %v840, %v839
        %v852 = vpack.c.b16 %v842, %v841
        %v853 = vpack.c.b16 %v844, %v843
        %v854 = vpack.c.b16 %v846, %v845
        %863 = vmatpush.bf16.msra.mxu0 %v854
        %864 = vmatpush.bf16.msra.mxu0 %v853
        %865 = vmatpush.bf16.msra.mxu0 %v852
        %866 = vmatpush.bf16.msra.mxu0 %v851
        %867 = vmatpush.bf16.msra.mxu0 %v850
        %868 = vmatpush.bf16.msra.mxu0 %v849
        %869 = vmatpush.bf16.msra.mxu0 %v848
        %870 = vmatpush.bf16.msra.mxu0 %v847
        %871 = vmatmul.bf16.gmra.mxu0 %v813
        %v872 = vpop.f32.mrf.mxu0
        %v873 = vadd.f32 0.0, %v872
        %v874 = vpop.f32.mrf.mxu0
        %v875 = vadd.f32 0.0, %v874
        %876 = vdwg.mxu0
        %v877 = vadd.f32 %v790, %v873
        %v878 = vadd.f32 %v792, %v875
        %v879 = vld [vmem:[#allocation9 + $0x2] sm:$0x1]
        %v880 = vperm.slane %v879, 0
        %v881 = vadd.f32 %v877, %v880
        %v882 = vadd.f32 %v878, %v880
        %v883 = vld [vmem:[#allocation9 + $0x3] sm:$0x1]
        %vm884 = vcmp.ge.f32.partialorder %v881, 0.0
        %vm885 = vcmp.ge.f32.partialorder %v882, 0.0
        %v886 = vperm.slane %v883, 0
        %v887 = vmul.f32 %v886, %v881
        %v888 = vmul.f32 %v886, %v882
        %v889 = vsel %vm884, %v881, %v887
        %v890 = vsel %vm885, %v882, %v888
        %891 = vst [vmem:[%s306] sm:$0xff] %v889
        %892 = vst [vmem:[%s306 + $0x8] sm:$0xff] %v890
        %s893 = sand.u32 %s142, 1
        %s894 = scalar_lea.sflag [#allocation6], %s893
        %s895 = sand.u32 %s142, 1
        %s896 = smul.addr %s895, 16
        %s897 = scalar_lea.vmem [#allocation13], %s896
        // Predicated region
        $region61: #{tpu_custom_call.1} parent=39 // pred_check
          %p898 = pneg %p152
        $region62: #{tpu_custom_call.1} parent=39 // pred_check_branch
          %900 = sbr.rel (%p898) target = $region64
        $region63: #{tpu_custom_call.1} parent=39 // pred_region
          %902 = vsyncadd %s894, 0
          %s903 = smul.addr %s24, 2
          %s904 = smul.addr %s903, 8
          %s905 = scalar_lea.hbm %s5, %s904
          %s906 = sshll.u32 %s897, 4
          %s907 = int_to_ptr.vmem [resolvable:$true] %s906
          %s908 = sshll.u32 %s905, 4
          %s909 = int_to_ptr.hbm [resolvable:$true] %s908
          %914 = dma.vmem_to_hbm [thread:$0]  %s907, 256, %s909, %s894, 128, 128, 8
        $region64: #{tpu_custom_call.1} parent=39 // pred_fallthru
          _
      $region40: #{tpu_custom_call.1} parent=5 // pred_fallthru
        _
      %p915 = scmp.le.s32.totalorder 2, %s19
      // Predicated region
      $region65: #{tpu_custom_call.1} parent=5 // pred_check
        %p916 = pneg %p915
      $region66: #{tpu_custom_call.1} parent=5 // pred_check_branch
        %918 = sbr.rel (%p916) target = $region68
      $region67: #{tpu_custom_call.1} parent=5 // pred_region
        %s919 = ssub.s32 %s19, 2
        // Predicated region
        $region69: #{tpu_custom_call.1} parent=67 // pred_check
          %p920 = pneg %p158
        $region70: #{tpu_custom_call.1} parent=67 // pred_check_branch
          %922 = sbr.rel (%p920) target = $region72
        $region71: #{tpu_custom_call.1} parent=67 // pred_region
          %s923 = sand.u32 %s143, 1
          %s924 = scalar_lea.sflag [#allocation6], %s923
          %s925 = sand.u32 %s143, 1
          %s926 = smul.addr %s925, 16
          %s927 = scalar_lea.vmem [#allocation13], %s926
          %929 = dma.done %s924, 256
        $region72: #{tpu_custom_call.1} parent=67 // pred_fallthru
          _
      $region68: #{tpu_custom_call.1} parent=5 // pred_fallthru
        _
    $region6: #{tpu_custom_call.1} parent=1 // loop_footer
      %s23 = sadd.s32 1, %s19
    $region7: #{tpu_custom_call.1} parent=1 // loop_footer_branch
      %18 = sbr.rel target = $region3
    $region8: #{tpu_custom_call.1} parent=1 // loop_exit
      _
    %930 = vsyncpa [#allocation5], 1
    %s931 = scalar_lea.sflag [#allocation5], 1
    %932 = vsyncpa %s931, 1
    %933 = vsyncpa [#allocation8], 1
    %934 = vsyncpa [#allocation11], 1
    %935 = vsyncpa [#allocation6], 1
    %s936 = scalar_lea.sflag [#allocation6], 1
    %937 = vsyncpa %s936, 1

</llo_original>
